<compile_context>
chip_gen: v7x
topology: tpu7x:2x2x1
jax: 0.10.0
libtpu: 0.0.40
codegen_flags: <defaults>
</compile_context>

<pallas_src>
import math
from functools import partial

import jax
import jax.numpy as jnp
from jax.experimental import pallas as pl
from jax.experimental.pallas import tpu as pltpu


def _round_up(x: int, m: int) -> int:
    return (x + m - 1) // m * m


def _tpu_generation() -> int:
    try:
        kind = jax.devices()[0].device_kind.lower()
    except Exception:
        return 6
    for g in (7, 6, 5, 4):
        if f"v{g}" in kind:
            return g
    return 6


def _tpu_vmem_capacity_bytes(gen: int) -> int:
    try:
        return int(pltpu.get_tpu_info().vmem_capacity_bytes)
    except Exception:
        return (64 << 20) if gen >= 7 else (128 << 20)


def _apply_glu(y, tile_n, act):
    v = y[:, :tile_n]
    g = y[:, tile_n:]
    if act == "relu":
        g = jnp.maximum(g, 0.0)
    else:  # 'gelu' — exact (erf) form to match torch.nn.GELU default
        g = jax.nn.gelu(g, approximate=False)
    return v * g


def _actglu_kernel_single_k(x_ref, w_ref, b_ref, o_ref, *, act):
    # Whole K dimension in one block: no accumulator scratch, no init/finalize.
    x = x_ref[...]
    if x.dtype != w_ref.dtype:
        x = x.astype(w_ref.dtype)          # cast after DMA — no extra HBM pass
    y = jnp.dot(x, w_ref[...], preferred_element_type=jnp.float32) + b_ref[...]
    o_ref[...] = _apply_glu(y, o_ref.shape[-1], act).astype(o_ref.dtype)


def _actglu_kernel_multi_k(x_ref, w_ref, b_ref, o_ref, acc_ref, *, act):
    k = pl.program_id(2)

    @pl.when(k == 0)
    def _init():
        acc_ref[...] = jnp.zeros_like(acc_ref)

    x = x_ref[...]
    if x.dtype != w_ref.dtype:
        x = x.astype(w_ref.dtype)
    acc_ref[...] += jnp.dot(x, w_ref[...], preferred_element_type=jnp.float32)

    @pl.when(k == pl.num_programs(2) - 1)
    def _finalize():
        y = acc_ref[...] + b_ref[...]
        o_ref[...] = _apply_glu(y, o_ref.shape[-1], act).astype(o_ref.dtype)


def prepare_actglu_params(weight, bias, *, tile_n=None, tile_k=None,
                          param_dtype=jnp.bfloat16):
    """One-time re-layout of nn.Linear(d_in, 2*d_out) params (do at init).

    weight: (2*d_out, d_in) PyTorch layout, bias: (2*d_out,).
    Returns (w_packed, b_packed, meta): w_packed is (d_in_p, 2*d_out_p) with the
    value/gate columns of each N tile adjacent.  Defaults: bf16 streaming dtype
    and generation-specific tile_n / tile_k.
    """
    two_d_out, d_in = weight.shape
    d_out = two_d_out // 2
    gen = _tpu_generation()

    if tile_n is None:
        tile_n = 512 if gen >= 6 else 256           # v6e/v7x: 512, v5e: 256
    tile_n = _round_up(min(tile_n, _round_up(d_out, 128)), 128)

    d_in_128 = _round_up(d_in, 128)
    if tile_k is None:
        # If the whole K dimension fits one block (within the per-generation VMEM
        # budget) take it in a single pass; otherwise use a 512-deep K reduction.
        tile_k_cap = 2048 if gen >= 7 else 8192
        tile_k = d_in_128 if d_in_128 <= tile_k_cap else 512
    tile_k = _round_up(min(tile_k, d_in_128), 128)

    d_out_p = _round_up(d_out, tile_n)
    d_in_p = _round_up(d_in, tile_k)
    n_n = d_out_p // tile_n

    wv = weight[:d_out].T                            # (d_in, d_out) value proj
    wg = weight[d_out:].T                            # (d_in, d_out) gate proj
    pad_w = ((0, d_in_p - d_in), (0, d_out_p - d_out))
    wv = jnp.pad(wv, pad_w)
    wg = jnp.pad(wg, pad_w)
    w_packed = jnp.concatenate(
        [wv.reshape(d_in_p, n_n, tile_n), wg.reshape(d_in_p, n_n, tile_n)], axis=-1
    ).reshape(d_in_p, 2 * d_out_p)
    if param_dtype is not None:
        w_packed = w_packed.astype(param_dtype)
    # TODO(synk): optional fp8 weight quantization (+ per-tile scales in the
    # epilogue) for the v7x memory-bound small-M regime.

    bv = jnp.pad(bias[:d_out], (0, d_out_p - d_out))
    bg = jnp.pad(bias[d_out:], (0, d_out_p - d_out))
    b_packed = jnp.concatenate(
        [bv.reshape(n_n, tile_n), bg.reshape(n_n, tile_n)], axis=-1
    ).reshape(1, 2 * d_out_p).astype(jnp.float32)

    meta = dict(d_in=d_in, d_out=d_out, d_in_p=d_in_p, d_out_p=d_out_p,
                tile_n=tile_n, tile_k=tile_k)
    return w_packed, b_packed, meta


def actglu(x, w_packed, b_packed, meta, *, tile_m=None, act="relu"):
    """x: (..., d_in) -> (..., d_out) using params from prepare_actglu_params."""
    d_in, d_out = meta["d_in"], meta["d_out"]
    d_in_p, d_out_p = meta["d_in_p"], meta["d_out_p"]
    tile_n, tile_k = meta["tile_n"], meta["tile_k"]

    lead = x.shape[:-1]
    m = math.prod(lead) if lead else 1
    out_dtype = x.dtype
    if m == 0:
        return jnp.zeros((*lead, d_out), out_dtype)

    gen = _tpu_generation()
    if tile_m is None:
        tile_m = 768 if gen >= 7 else (1024 if gen == 6 else 512)

    align_m = 16                       # bf16 sublane packing (also a multiple of 8)
    tile_m = max(align_m, min(_round_up(tile_m, align_m), _round_up(m, align_m)))
    m_p = _round_up(m, tile_m)
    n_tiles_n = d_out_p // tile_n

    # v7x has 2 TensorCores: ensure at least 2 parallel tiles so neither idles.
    if gen >= 7 and (m_p // tile_m) * n_tiles_n < 2 and m >= 2 * align_m:
        tile_m = _round_up(-(-m // 2), align_m)
        m_p = _round_up(m, tile_m)

    x2d = x.reshape(m, d_in)
    stream_dtype = w_packed.dtype
    if x2d.dtype != stream_dtype and n_tiles_n > 3:
        # Many N tiles re-stream x: pre-cast once (fuses with the pad below).
        x2d = x2d.astype(stream_dtype)
    if m_p != m or d_in_p != d_in:
        x2d = jnp.pad(x2d, ((0, m_p - m), (0, d_in_p - d_in)))

    single_k = d_in_p == tile_k

    # VMEM budget: double-buffered x/W/bias/out streams + f32 (tile_m, 2*tile_n)
    # accumulator / matmul result, capped at ~75% of this generation's VMEM.
    x_item = jnp.dtype(x2d.dtype).itemsize
    w_item = jnp.dtype(stream_dtype).itemsize
    o_item = jnp.dtype(out_dtype).itemsize
    est = 2 * (tile_m * tile_k * x_item + tile_k * 2 * tile_n * w_item
               + 2 * tile_n * 4 + tile_m * tile_n * o_item)
    est += tile_m * 2 * tile_n * 4
    vmem_cap = _tpu_vmem_capacity_bytes(gen)
    vmem_limit = min(max(int(1.25 * est) + (8 << 20), 32 << 20),
                     int(0.75 * vmem_cap))

    if single_k:
        grid = (m_p // tile_m, n_tiles_n)
        in_specs = [
            pl.BlockSpec((tile_m, tile_k), lambda i, j: (i, 0)),       # x tile
            pl.BlockSpec((tile_k, 2 * tile_n), lambda i, j: (0, j)),   # W [v|g]
            pl.BlockSpec((1, 2 * tile_n), lambda i, j: (0, j)),        # bias
        ]
        out_specs = pl.BlockSpec((tile_m, tile_n), lambda i, j: (i, j))
        scratch_shapes = []
        dims = ("parallel", "parallel")
        kernel = partial(_actglu_kernel_single_k, act=act)
    else:
        grid = (m_p // tile_m, n_tiles_n, d_in_p // tile_k)
        in_specs = [
            pl.BlockSpec((tile_m, tile_k), lambda i, j, k: (i, k)),
            # If profiling shows an exposed DMA bubble at (i, j) boundaries,
            # add pipeline_mode=pl.Buffered(3) to this weight spec.
            pl.BlockSpec((tile_k, 2 * tile_n), lambda i, j, k: (k, j)),
            pl.BlockSpec((1, 2 * tile_n), lambda i, j, k: (0, j)),
        ]
        out_specs = pl.BlockSpec((tile_m, tile_n), lambda i, j, k: (i, j))
        scratch_shapes = [pltpu.VMEM((tile_m, 2 * tile_n), jnp.float32)]
        dims = ("parallel", "parallel", "arbitrary")
        kernel = partial(_actglu_kernel_multi_k, act=act)

    out_p = pl.pallas_call(
        kernel,
        out_shape=jax.ShapeDtypeStruct((m_p, d_out_p), out_dtype),
        grid_spec=pltpu.PrefetchScalarGridSpec(
            num_scalar_prefetch=0,
            grid=grid,
            in_specs=in_specs,
            out_specs=out_specs,
            scratch_shapes=scratch_shapes,
        ),
        compiler_params=pltpu.CompilerParams(
            dimension_semantics=dims,
            vmem_limit_bytes=vmem_limit,
        ),
    )(x2d, w_packed, b_packed)

    if m_p != m or d_out_p != d_out:
        out_p = out_p[:m, :d_out]
    return out_p.reshape(*lead, d_out)


def actglu_ref(x, weight, bias):
    y = jnp.einsum("...i,oi->...o", x, weight) + bias
    d_out = weight.shape[0] // 2
    v, g = y[..., :d_out], y[..., d_out:]
    return v * jnp.maximum(g, 0.0)


if __name__ == "__main__":
    key = jax.random.PRNGKey(0)
    batch, seq, d_in, d_out = 2, 8, 32, 32

    k1, k2, k3 = jax.random.split(key, 3)
    x = jax.random.normal(k1, (batch, seq, d_in), dtype=jnp.float32)
    # nn.Linear(d_in, 2*d_out) parameters in PyTorch layout
    weight = jax.random.normal(k2, (2 * d_out, d_in), dtype=jnp.float32) * 0.1
    bias = jax.random.normal(k3, (2 * d_out,), dtype=jnp.float32) * 0.1

    # One-time parameter re-layout (lives at module init in real use).
    # Default bf16 streaming; the kernel accumulates in f32.
    w_packed, b_packed, meta = prepare_actglu_params(weight, bias)

    out = jax.block_until_ready(actglu(x, w_packed, b_packed, meta))

    # Reference on bf16-rounded inputs (kernel streams bf16, accumulates in f32).
    xq = x.astype(jnp.bfloat16).astype(jnp.float32)
    wq = weight.astype(jnp.bfloat16).astype(jnp.float32)
    ref = jax.block_until_ready(actglu_ref(xq, wq, bias))

    assert out.shape == (batch, seq, d_out)
    assert jnp.allclose(out, ref, atol=2e-2, rtol=2e-2), float(
        jnp.max(jnp.abs(out - ref)))
    print("KERNEL_OK")
</pallas_src>

<mosaic_0001>
module attributes {stable_mosaic.version = 11 : i64} {
  func.func @_actglu_kernel_single_k(%arg0: i32, %arg1: i32, %arg2: memref<16x128xf32, #tpu.memory_space<vmem>>, %arg3: memref<128x256xbf16, #tpu.memory_space<vmem>>, %arg4: memref<1x256xf32, #tpu.memory_space<vmem>>, %arg5: memref<16x128xf32, #tpu.memory_space<vmem>>) attributes {dimension_semantics = [#tpu.dimension_semantics<parallel>, #tpu.dimension_semantics<parallel>], iteration_bounds = array<i64: 1, 1>, scalar_prefetch = 0 : i64, scratch_operands = 0 : i64, tpu.core_type = #tpu.core_type<tc>, window_params = [{transform_indices = @transform_0, window_bounds = array<i64: 16, 128>}, {transform_indices = @transform_1, window_bounds = array<i64: 128, 256>}, {transform_indices = @transform_2, window_bounds = array<i64: 1, 256>}, {transform_indices = @transform_3, window_bounds = array<i64: 16, 128>}]} {
    %c0 = arith.constant 0 : index
    %c0_0 = arith.constant 0 : index
    %0 = vector.load %arg2[%c0, %c0_0] : memref<16x128xf32, #tpu.memory_space<vmem>>, vector<16x128xf32>
    %1 = arith.truncf %0 : vector<16x128xf32> to vector<16x128xbf16>
    %c0_1 = arith.constant 0 : index
    %c0_2 = arith.constant 0 : index
    %2 = vector.load %arg3[%c0_1, %c0_2] : memref<128x256xbf16, #tpu.memory_space<vmem>>, vector<128x256xbf16>
    %cst = arith.constant dense<0.000000e+00> : vector<16x256xf32>
    %3 = tpu.matmul %1, %2, %cst {dimension_numbers = #tpu.dot_dimension_numbers<[1], [0], [0], [1], [0, 0, 1, 1], [], []>} : vector<16x128xbf16>, vector<128x256xbf16>, vector<16x256xf32> -> vector<16x256xf32>
    %c0_3 = arith.constant 0 : index
    %c0_4 = arith.constant 0 : index
    %4 = vector.load %arg4[%c0_3, %c0_4] : memref<1x256xf32, #tpu.memory_space<vmem>>, vector<1x256xf32>
    %5 = vector.broadcast %4 : vector<1x256xf32> to vector<16x256xf32>
    %6 = arith.addf %3, %5 : vector<16x256xf32>
    %7 = vector.extract_strided_slice %6 {offsets = [0, 0], sizes = [16, 128], strides = [1, 1]} : vector<16x256xf32> to vector<16x128xf32>
    %8 = vector.extract_strided_slice %6 {offsets = [0, 128], sizes = [16, 128], strides = [1, 1]} : vector<16x256xf32> to vector<16x128xf32>
    %cst_5 = arith.constant 0.000000e+00 : f32
    %9 = vector.broadcast %cst_5 : f32 to vector<16x128xf32>
    %10 = arith.maximumf %8, %9 : vector<16x128xf32>
    %11 = arith.mulf %7, %10 : vector<16x128xf32>
    %c0_6 = arith.constant 0 : index
    %c0_7 = arith.constant 0 : index
    %12 = vector.load %arg5[%c0_6, %c0_7] : memref<16x128xf32, #tpu.memory_space<vmem>>, vector<16x128xf32>
    tpu.vector_store %arg5[%c0_6, %c0_7], %11 {strides = array<i32>} : memref<16x128xf32, #tpu.memory_space<vmem>>, vector<16x128xf32>,
    return
  }
  func.func @transform_0(%arg0: i32, %arg1: i32) -> (i32, i32) {
    %c0_i32 = arith.constant 0 : i32
    %c0_i32_0 = arith.constant 0 : i32
    return %arg0, %c0_i32 : i32, i32
  }
  func.func @transform_1(%arg0: i32, %arg1: i32) -> (i32, i32) {
    %c0_i32 = arith.constant 0 : i32
    %c0_i32_0 = arith.constant 0 : i32
    return %c0_i32, %arg1 : i32, i32
  }
  func.func @transform_2(%arg0: i32, %arg1: i32) -> (i32, i32) {
    %c0_i32 = arith.constant 0 : i32
    %c0_i32_0 = arith.constant 0 : i32
    return %c0_i32, %arg1 : i32, i32
  }
  func.func @transform_3(%arg0: i32, %arg1: i32) -> (i32, i32) {
    %c0_i32 = arith.constant 0 : i32
    return %arg0, %arg1 : i32, i32
  }
}

</mosaic_0001>

<llo_original>
// kernel: tpu_custom_call.1
$region0: #{tpu_custom_call.1}
  #allocation0 [shape = 'u32[]', space=smem, size = 0x4, offset = 0x4, fixed_abs, tag = 'smem constant byte address 0x4 - core index']
  #allocation1 [shape = 'u32[144,128]{1,0:T(1,128)}', space=vmem, size = 0x12000, scoped, tag = 'internal scratch']
  %s0 = inlined_call_operand.hbm [shape: f32[16,128], index: 0, kind: input, shape index: {}]
  %s1 = inlined_call_operand.hbm [shape: bf16[128,256], index: 1, kind: input, shape index: {}]
  %s2 = inlined_call_operand.vmem [shape: f32[1,256], index: 2, kind: input, shape index: {}]
  %s3 = inlined_call_operand.hbm [shape: f32[16,128], index: 3, kind: output, shape index: {}]
  %s4 = sld [smem:[#allocation0]]
  $region30: #{tpu_custom_call.1} parent=0
    _
  %s6 = ssub.s32 1, %s4
  %s7 = scalar_select 0, %s6, %s4
  $region1: #{tpu_custom_call.1} parent=0
    #allocation2 [shape = 'u8[8192]{0}', space=vmem, size = 0x2000, scoped, tag = 'input window, operand 0, single buffered']
    #allocation3 [shape = 's32[1]{0}', space=sflag, size = 0x4, scoped, tag = 'scoped memory for tpu_custom_call.1']
    #allocation4 [shape = 's32[1]{0}', space=sflag, size = 0x4, scoped, tag = 'scoped memory for tpu_custom_call.1']
    #allocation5 [shape = 'u8[65536]{0}', space=vmem, size = 0x10000, scoped, tag = 'input window, operand 1, single buffered']
    #allocation6 [shape = 's32[1]{0}', space=sflag, size = 0x4, scoped, tag = 'scoped memory for tpu_custom_call.1']
    #allocation7 [shape = 'u8[8192]{0}', space=vmem, size = 0x2000, scoped, tag = 'output window, operand 0, single buffered']
    %8 = vsyncpa [#allocation3], 0
    %9 = vsyncpa [#allocation6], 0
    %10 = vsyncpa [#allocation4], 0
    // Predicated region
    $region2: #{tpu_custom_call.1} parent=1 // pred_check
      _
    $region3: #{tpu_custom_call.1} parent=1 // pred_check_branch
      %12 = sbr.rel (0) target = $region5
    $region4: #{tpu_custom_call.1} parent=1 // pred_region
      %s14 = ssub.s32 256, 256
      %15 = vsyncadd [#allocation3], %s14
      %s16 = sshll.u32 [#allocation2], 4
      %s17 = int_to_ptr.vmem [resolvable:$true] %s16
      %22 = dma.hbm_to_vmem [thread:$0]  %s0, 256, %s17, [#allocation3], 128, 128, 8
    $region5: #{tpu_custom_call.1} parent=1 // pred_fallthru
      _
    // Predicated region
    $region6: #{tpu_custom_call.1} parent=1 // pred_check
      _
    $region7: #{tpu_custom_call.1} parent=1 // pred_check_branch
      %24 = sbr.rel (0) target = $region9
    $region8: #{tpu_custom_call.1} parent=1 // pred_region
      %s26 = ssub.s32 2048, 2048
      %27 = vsyncadd [#allocation6], %s26
      %s28 = sshll.u32 [#allocation5], 4
      %s29 = int_to_ptr.vmem [resolvable:$true] %s28
      %34 = dma.hbm_to_vmem [thread:$0]  %s1, 2048, %s29, [#allocation6], 128, 128, 8
    $region9: #{tpu_custom_call.1} parent=1 // pred_fallthru
      _
    // Predicated region
    $region10: #{tpu_custom_call.1} parent=1 // pred_check
      _
    $region11: #{tpu_custom_call.1} parent=1 // pred_check_branch
      %36 = sbr.rel (0) target = $region13
    $region12: #{tpu_custom_call.1} parent=1 // pred_region
      _
    $region13: #{tpu_custom_call.1} parent=1 // pred_fallthru
      _
    // Predicated region
    $region14: #{tpu_custom_call.1} parent=1 // pred_check
      _
    $region15: #{tpu_custom_call.1} parent=1 // pred_check_branch
      %38 = sbr.rel (0) target = $region17
    $region16: #{tpu_custom_call.1} parent=1 // pred_region
      %39 = dma.done [#allocation3], 256
    $region17: #{tpu_custom_call.1} parent=1 // pred_fallthru
      _
    // Predicated region
    $region18: #{tpu_custom_call.1} parent=1 // pred_check
      _
    $region19: #{tpu_custom_call.1} parent=1 // pred_check_branch
      %41 = sbr.rel (0) target = $region21
    $region20: #{tpu_custom_call.1} parent=1 // pred_region
      %42 = dma.done [#allocation6], 2048
    $region21: #{tpu_custom_call.1} parent=1 // pred_fallthru
      _
    %v44 = vld [vmem:[#allocation2] sm:$0xff]
    %v45 = vld [vmem:[#allocation2 + $0x8] sm:$0xff]
    %v46 = vpack.c.bf16 %v45, %v44
    %v47 = vld [vmem:[#allocation5] sm:$0xff]
    %v48 = vld [vmem:[#allocation5 + $0x8] sm:$0xff]
    %v49 = vld [vmem:[#allocation5 + $0x10] sm:$0xff]
    %v50 = vld [vmem:[#allocation5 + $0x18] sm:$0xff]
    %v51 = vld [vmem:[#allocation5 + $0x20] sm:$0xff]
    %v52 = vld [vmem:[#allocation5 + $0x28] sm:$0xff]
    %v53 = vld [vmem:[#allocation5 + $0x30] sm:$0xff]
    %v54 = vld [vmem:[#allocation5 + $0x38] sm:$0xff]
    %v55 = vld [vmem:[#allocation5 + $0x40] sm:$0xff]
    %v56 = vld [vmem:[#allocation5 + $0x48] sm:$0xff]
    %v57 = vld [vmem:[#allocation5 + $0x50] sm:$0xff]
    %v58 = vld [vmem:[#allocation5 + $0x58] sm:$0xff]
    %v59 = vld [vmem:[#allocation5 + $0x60] sm:$0xff]
    %v60 = vld [vmem:[#allocation5 + $0x68] sm:$0xff]
    %v61 = vld [vmem:[#allocation5 + $0x70] sm:$0xff]
    %v62 = vld [vmem:[#allocation5 + $0x78] sm:$0xff]
    %v63 = vld [vmem:[%s2] sm:$0x3]
    %v65 = vlaneseq
    %v66 = vshrl.u32 %v65, 7
    %v67 = vsub.s32 0, %v66
    %v68 = vrot.slane %v63, %v67
    %v69 = vlaneseq
    %v70 = vshrl.u32 %v69, 7
    %v71 = vsub.s32 1, %v70
    %v72 = vrot.slane %v63, %v71
    %v91 = vunpack.c.l.b16 %v47
    %v92 = vunpack.c.h.b16 %v47
    %v93 = vunpack.c.l.b16 %v48
    %v94 = vunpack.c.h.b16 %v48
    %v95 = vunpack.c.l.b16 %v49
    %v96 = vunpack.c.h.b16 %v49
    %v97 = vunpack.c.l.b16 %v50
    %v98 = vunpack.c.h.b16 %v50
    %v99 = vunpack.c.l.b16 %v51
    %v100 = vunpack.c.h.b16 %v51
    %v101 = vunpack.c.l.b16 %v52
    %v102 = vunpack.c.h.b16 %v52
    %v103 = vunpack.c.l.b16 %v53
    %v104 = vunpack.c.h.b16 %v53
    %v105 = vunpack.c.l.b16 %v54
    %v106 = vunpack.c.h.b16 %v54
    %v107 = vunpack.c.l.b16 %v55
    %v108 = vunpack.c.h.b16 %v55
    %v109 = vunpack.c.l.b16 %v56
    %v110 = vunpack.c.h.b16 %v56
    %v111 = vunpack.c.l.b16 %v57
    %v112 = vunpack.c.h.b16 %v57
    %v113 = vunpack.c.l.b16 %v58
    %v114 = vunpack.c.h.b16 %v58
    %v115 = vunpack.c.l.b16 %v59
    %v116 = vunpack.c.h.b16 %v59
    %v117 = vunpack.c.l.b16 %v60
    %v118 = vunpack.c.h.b16 %v60
    %v119 = vunpack.c.l.b16 %v61
    %v120 = vunpack.c.h.b16 %v61
    %v121 = vunpack.c.l.b16 %v62
    %v122 = vunpack.c.h.b16 %v62
    %v123 = vpack.c.b16 %v93, %v91
    %v124 = vpack.c.b16 %v94, %v92
    %v125 = vpack.c.b16 %v97, %v95
    %v126 = vpack.c.b16 %v98, %v96
    %v127 = vpack.c.b16 %v101, %v99
    %v128 = vpack.c.b16 %v102, %v100
    %v129 = vpack.c.b16 %v105, %v103
    %v130 = vpack.c.b16 %v106, %v104
    %v131 = vpack.c.b16 %v109, %v107
    %v132 = vpack.c.b16 %v110, %v108
    %v133 = vpack.c.b16 %v113, %v111
    %v134 = vpack.c.b16 %v114, %v112
    %v135 = vpack.c.b16 %v117, %v115
    %v136 = vpack.c.b16 %v118, %v116
    %v137 = vpack.c.b16 %v121, %v119
    %v138 = vpack.c.b16 %v122, %v120
    %155 = vmatprep.subr.bf16.mxu0 %v124
    %156 = vmatpush1.bf16.msra.mxu0 %v123
    %157 = vmatprep.subr.bf16.mxu0 %v126
    %158 = vmatpush1.bf16.msra.mxu0 %v125
    %159 = vmatprep.subr.bf16.mxu0 %v128
    %160 = vmatpush1.bf16.msra.mxu0 %v127
    %161 = vmatprep.subr.bf16.mxu0 %v130
    %162 = vmatpush1.bf16.msra.mxu0 %v129
    %163 = vmatprep.subr.bf16.mxu0 %v132
    %164 = vmatpush1.bf16.msra.mxu0 %v131
    %165 = vmatprep.subr.bf16.mxu0 %v134
    %166 = vmatpush1.bf16.msra.mxu0 %v133
    %167 = vmatprep.subr.bf16.mxu0 %v136
    %168 = vmatpush1.bf16.msra.mxu0 %v135
    %169 = vmatprep.subr.bf16.mxu0 %v138
    %170 = vmatpush1.bf16.msra.mxu0 %v137
    %171 = vmatprep.subr.bf16.mxu0 0
    %172 = vmatpush1.bf16.msra.mxu0 0
    %173 = vmatprep.subr.bf16.mxu0 0
    %174 = vmatpush1.bf16.msra.mxu0 0
    %175 = vmatprep.subr.bf16.mxu0 0
    %176 = vmatpush1.bf16.msra.mxu0 0
    %177 = vmatprep.subr.bf16.mxu0 0
    %178 = vmatpush1.bf16.msra.mxu0 0
    %179 = vmatprep.subr.bf16.mxu0 0
    %180 = vmatpush1.bf16.msra.mxu0 0
    %181 = vmatprep.subr.bf16.mxu0 0
    %182 = vmatpush1.bf16.msra.mxu0 0
    %183 = vmatprep.subr.bf16.mxu0 0
    %184 = vmatpush1.bf16.msra.mxu0 0
    %185 = vmatprep.subr.bf16.mxu0 0
    %186 = vmatpush1.bf16.msra.mxu0 0
    %187 = vmatprep.mubr.bf16.mxu0 0
    %188 = vmatmul.mubr.bf16.gmra.mrb[0].mxu0 %v46
    %v189 = vpop.f32.mrb[0].mxu0
    %v190 = vadd.f32 %v68, %v189
    %v191 = vpop.f32.mrb[0].mxu0
    %v192 = vadd.f32 %v72, %v191
    %v193 = vpop.f32.mrb[0].mxu0
    %v194 = vadd.f32 %v68, %v193
    %v195 = vpop.f32.mrb[0].mxu0
    %v196 = vadd.f32 %v72, %v195
    %197 = vdwg.mxu0
    %v198 = vmax.f32 %v192, 0.0
    %v199 = vmax.f32 %v196, 0.0
    %v200 = vmul.f32 %v190, %v198
    %v201 = vmul.f32 %v194, %v199
    %202 = vst [vmem:[#allocation7] sm:$0xff] %v200
    %203 = vst [vmem:[#allocation7 + $0x8] sm:$0xff] %v201
    // Predicated region
    $region22: #{tpu_custom_call.1} parent=1 // pred_check
      _
    $region23: #{tpu_custom_call.1} parent=1 // pred_check_branch
      %205 = sbr.rel (0) target = $region25
    $region24: #{tpu_custom_call.1} parent=1 // pred_region
      %s207 = ssub.s32 256, 256
      %208 = vsyncadd [#allocation4], %s207
      %s209 = sshll.u32 [#allocation7], 4
      %s210 = int_to_ptr.vmem [resolvable:$true] %s209
      %215 = dma.vmem_to_hbm [thread:$0]  %s210, 256, %s3, [#allocation4], 128, 128, 8
    $region25: #{tpu_custom_call.1} parent=1 // pred_fallthru
      _
    // Predicated region
    $region26: #{tpu_custom_call.1} parent=1 // pred_check
      _
    $region27: #{tpu_custom_call.1} parent=1 // pred_check_branch
      %217 = sbr.rel (0) target = $region29
    $region28: #{tpu_custom_call.1} parent=1 // pred_region
      %218 = dma.done [#allocation4], 256
    $region29: #{tpu_custom_call.1} parent=1 // pred_fallthru
      _
    %219 = vsyncpa [#allocation3], 1
    %220 = vsyncpa [#allocation6], 1
    %221 = vsyncpa [#allocation4], 1

</llo_original>
